<compile_context>
chip_gen: v7x
topology: tpu7x:2x2x1
jax: 0.10.0
libtpu: 0.0.40
codegen_flags: <defaults>
</compile_context>

<pallas_src>
import numpy as np
import jax
import jax.numpy as jnp
from jax.experimental import pallas as pl
from jax.experimental.pallas import tpu as pltpu

N_NODES = 77          # Chicago community areas (hard-coded loop bound in the reference forward)
NEW_SIZE = 80         # out_features (= n_hidden, since n_heads == 1 and is_concat == True)
NEG_SLOPE = 0.2       # LeakyReLU negative slope
N_PAD = 128
H_PAD = 128
EL_COL = NEW_SIZE     # g_ext column holding h @ (w @ a_left)   -> query-side score el_i
ER_COL = NEW_SIZE + 1 # g_ext column holding h @ (w @ a_right)  -> key-side score  er_j


def _round_up(x, m):
    return ((x + m - 1) // m) * m


def _gat_kernel(h_ref, w_ref, adj_ref, s_ref, out_ref):
    # h_ref   : (N_PAD, F)      f32 node features (zero rows for padded nodes)
    # w_ref   : (F, H_PAD)      f32 projection; cols [0:80] = W, col 80 = W@a_l, col 81 = W@a_r
    # adj_ref : (N_PAD, N_PAD)  f32 adjacency (0/1), padded rows have a 1 on the diagonal
    # s_ref   : (N_PAD, N_PAD)  f32 structural interaction
    neg_inf = jnp.float32(-jnp.inf)

    # Projection + attention scores in one MXU pass.
    g_ext = jnp.dot(h_ref[...], w_ref[...], preferred_element_type=jnp.float32)  # (N_PAD, H_PAD)

    is_masked = adj_ref[...] == 0.0

    # ---- softmax(s) first (keeps the live f32 tile count low; s dropped right after) ----
    s = jnp.where(is_masked, neg_inf, s_ref[...])
    s = jnp.exp(s - jnp.max(s, axis=1, keepdims=True))
    s_prime = s * pl.reciprocal(jnp.sum(s, axis=1, keepdims=True), approx=True)

    # ---- softmax(LeakyReLU(e)) ----
    el = g_ext[:, EL_COL:EL_COL + 1]                    # (N_PAD, 1)  score of query node i
    er = jnp.transpose(g_ext[:, ER_COL:ER_COL + 1])     # (1, N_PAD)  score of key node j
    pre = el + er                                       # (N_PAD, N_PAD)
    e = jnp.where(pre >= 0.0, pre, NEG_SLOPE * pre)     # LeakyReLU(0.2)
    e = jnp.where(is_masked, neg_inf, e)
    e = jnp.exp(e - jnp.max(e, axis=1, keepdims=True))
    a_att = e * pl.reciprocal(jnp.sum(e, axis=1, keepdims=True), approx=True)

    # ---- third softmax. comb = a + s' is a sum of two probability rows, so it lies in
    # [0, 2] and exp() needs no max-shift. The reference lets adj==0 positions contribute
    # exp(0); only the *padded* key columns (j >= N_NODES) must be excluded: they hold
    # comb == 0 exactly, so subtract their exp(0) count from the denominator, and their
    # numerator junk multiplies the all-zero padded rows of g_ext in the output matmul. ----
    comb = jnp.exp(a_att + s_prime)
    denom = jnp.sum(comb, axis=1, keepdims=True) - jnp.float32(N_PAD - N_NODES)
    new_attention = comb * pl.reciprocal(denom, approx=True)

    # TODO(synk): nn.Dropout(0.3) train-mode RNG has no deterministic equivalent; applied as identity (eval mode).
    out_ref[...] = jnp.dot(new_attention, g_ext, preferred_element_type=jnp.float32)


def precompute_gat_params(w, a, adj, s):
    """One-time packing of all call-invariant GraphAttentionLayer operands.

    w: (F, 80) linear weight (in x out); a: (2, 80) attention vector [left; right];
    adj, s: (77, 77).
    """
    w = jnp.asarray(w, jnp.float32)
    a = jnp.asarray(a, jnp.float32)
    f = w.shape[0]
    f_pad = _round_up(max(f, 8), 8)          # sublane-align the contraction axis only

    w_ext = jnp.zeros((f_pad, H_PAD), jnp.float32)
    w_ext = w_ext.at[:f, :NEW_SIZE].set(w)
    w_ext = w_ext.at[:f, EL_COL].set(w @ a[0])     # fold el = g·a_l into the projection
    w_ext = w_ext.at[:f, ER_COL].set(w @ a[1])     # fold er = g·a_r into the projection

    n = adj.shape[0]
    adj_pad = jnp.zeros((N_PAD, N_PAD), jnp.float32).at[:n, :n].set(adj)
    # keep padded query rows non-degenerate (avoid all -inf softmax rows); sliced away later
    pad_diag = jnp.arange(n, N_PAD)
    adj_pad = adj_pad.at[pad_diag, pad_diag].set(1.0)
    s_pad = jnp.zeros((N_PAD, N_PAD), jnp.float32).at[:n, :n].set(s)

    return {"w_ext": w_ext, "adj": adj_pad, "s": s_pad}


def graph_attention_layer(h, params):
    """h: (77, F) features; params: output of precompute_gat_params."""
    n, f = h.shape
    w_ext = params["w_ext"]
    f_pad = w_ext.shape[0]
    h_pad = jnp.zeros((N_PAD, f_pad), jnp.float32).at[:n, :f].set(h)

    out = pl.pallas_call(
        _gat_kernel,
        out_shape=jax.ShapeDtypeStruct((N_PAD, H_PAD), jnp.float32),
        in_specs=[pl.BlockSpec(memory_space=pltpu.MemorySpace.VMEM)] * 4,
        out_specs=pl.BlockSpec(memory_space=pltpu.MemorySpace.VMEM),
        compiler_params=pltpu.CompilerParams(vmem_limit_bytes=4 << 20),
    )(h_pad, w_ext, params["adj"], params["s"])
    return out[:n, :NEW_SIZE]


def adsf_forward(road_representation, poi_representation, inflows, outflows, batch_no, params):
    # Feature-matrix assembly (glue, plain JAX). Mirrors the per-node vstack + flatten of
    # the reference; every node's flattened block has the same length, so the
    # "pad with average to `biggest`" branch is a no-op (len(temp) == biggest).
    fm = jnp.stack(
        [road_representation * 0.167,
         poi_representation * 0.501,
         inflows[:, batch_no, :] * 0.166,
         outflows[:, batch_no, :] * 0.166],
        axis=1)                                          # (77, 4, D)
    h = fm.reshape(N_NODES, -1).astype(jnp.float32)      # (77, 4*D) == new_matrix
    return graph_attention_layer(h, params)


if __name__ == "__main__":
    # TODO(synk): preprocessing() (file reads + networkx/scipy structural fingerprints) is replaced
    # by deterministic synthetic adjacency / structural-interaction matrices of the same shape.
    D = 8       # per-source feature width
    B = 2       # number of flow batches
    batch_no = 1

    key = jax.random.PRNGKey(0)
    k_road, k_poi, k_in, k_out, k_s, k_w, k_a = jax.random.split(key, 7)

    road = jax.random.normal(k_road, (N_NODES, D), jnp.float32)
    poi = jax.random.normal(k_poi, (N_NODES, D), jnp.float32)
    inflows = jax.random.normal(k_in, (N_NODES, B, D), jnp.float32)
    outflows = jax.random.normal(k_out, (N_NODES, B, D), jnp.float32)

    # synthetic 77x77 symmetric 0/1 adjacency (ring + skip-5 edges): every row has neighbors
    idx = np.arange(N_NODES)
    adj_np = np.zeros((N_NODES, N_NODES), np.float32)
    adj_np[idx, (idx + 1) % N_NODES] = 1.0
    adj_np[(idx + 1) % N_NODES, idx] = 1.0
    adj_np[idx, (idx + 5) % N_NODES] = 1.0
    adj_np[(idx + 5) % N_NODES, idx] = 1.0
    adjacency = jnp.asarray(adj_np)

    # synthetic structural-interaction matrix (positive, deterministic)
    structural = jax.random.uniform(k_s, (N_NODES, N_NODES), jnp.float32, minval=0.0001, maxval=1.0)

    # GraphAttentionLayer parameters (deterministic init; in_features = 4*D, out_features = 80)
    in_features = 4 * D
    w = 0.1 * jax.random.normal(k_w, (in_features, NEW_SIZE), jnp.float32)   # linear (no bias)
    a = 0.1 * jax.random.normal(k_a, (2, NEW_SIZE), jnp.float32)             # attn weight [left; right]

    # Hoisted, call-invariant packing (done once, outside the hot path).
    params = precompute_gat_params(w, a, adjacency, structural)
    forward = jax.jit(adsf_forward)

    out = forward(road, poi, inflows, outflows, batch_no, params)
    out = jax.block_until_ready(out)
    assert out.shape == (N_NODES, NEW_SIZE), out.shape
    assert bool(jnp.all(jnp.isfinite(out)))
    print("KERNEL_OK")
</pallas_src>

<mosaic_0001>
module attributes {stable_mosaic.version = 11 : i64} {
  func.func @_gat_kernel(%arg0: memref<128x32xf32, #tpu.memory_space<vmem>>, %arg1: memref<32x128xf32, #tpu.memory_space<vmem>>, %arg2: memref<128x128xf32, #tpu.memory_space<vmem>>, %arg3: memref<128x128xf32, #tpu.memory_space<vmem>>, %arg4: memref<128x128xf32, #tpu.memory_space<vmem>>) attributes {dimension_semantics = [], scalar_prefetch = 0 : i64, scratch_operands = 0 : i64, tpu.core_type = #tpu.core_type<tc>} {
    %c0 = arith.constant 0 : index
    %c0_0 = arith.constant 0 : index
    %0 = vector.load %arg0[%c0, %c0_0] : memref<128x32xf32, #tpu.memory_space<vmem>>, vector<128x32xf32>
    %c0_1 = arith.constant 0 : index
    %c0_2 = arith.constant 0 : index
    %1 = vector.load %arg1[%c0_1, %c0_2] : memref<32x128xf32, #tpu.memory_space<vmem>>, vector<32x128xf32>
    %cst = arith.constant dense<0.000000e+00> : vector<128x128xf32>
    %2 = tpu.matmul %0, %1, %cst {dimension_numbers = #tpu.dot_dimension_numbers<[1], [0], [0], [1], [0, 0, 1, 1], [], []>} : vector<128x32xf32>, vector<32x128xf32>, vector<128x128xf32> -> vector<128x128xf32>
    %c0_3 = arith.constant 0 : index
    %c0_4 = arith.constant 0 : index
    %3 = vector.load %arg2[%c0_3, %c0_4] : memref<128x128xf32, #tpu.memory_space<vmem>>, vector<128x128xf32>
    %cst_5 = arith.constant 0.000000e+00 : f32
    %4 = vector.broadcast %cst_5 : f32 to vector<128x128xf32>
    %5 = arith.cmpf oeq, %3, %4 : vector<128x128xf32>
    %c0_6 = arith.constant 0 : index
    %c0_7 = arith.constant 0 : index
    %6 = vector.load %arg3[%c0_6, %c0_7] : memref<128x128xf32, #tpu.memory_space<vmem>>, vector<128x128xf32>
    %cst_8 = arith.constant 0xFF800000 : f32
    %7 = vector.broadcast %cst_8 : f32 to vector<128x128xf32>
    %8 = arith.select %5, %7, %6 : vector<128x128xi1>, vector<128x128xf32>
    %cst_9 = arith.constant dense<0xFF800000> : vector<128xf32>
    %9 = vector.multi_reduction <maximumf>, %8, %cst_9 [1] : vector<128x128xf32> to vector<128xf32>
    %10 = vector.shape_cast %9 : vector<128xf32> to vector<128x1xf32>
    %11 = vector.broadcast %10 : vector<128x1xf32> to vector<128x128xf32>
    %12 = arith.subf %8, %11 : vector<128x128xf32>
    %13 = math.exp %12 : vector<128x128xf32>
    %cst_10 = arith.constant dense<0.000000e+00> : vector<128xf32>
    %14 = vector.multi_reduction <add>, %13, %cst_10 [1] : vector<128x128xf32> to vector<128xf32>
    %15 = vector.shape_cast %14 : vector<128xf32> to vector<128x1xf32>
    %16 = tpu.reciprocal %15 {approx = true} : vector<128x1xf32> -> vector<128x1xf32>
    %17 = vector.broadcast %16 : vector<128x1xf32> to vector<128x128xf32>
    %18 = arith.mulf %13, %17 : vector<128x128xf32>
    %19 = vector.extract_strided_slice %2 {offsets = [0, 80], sizes = [128, 1], strides = [1, 1]} : vector<128x128xf32> to vector<128x1xf32>
    %20 = vector.extract_strided_slice %2 {offsets = [0, 81], sizes = [128, 1], strides = [1, 1]} : vector<128x128xf32> to vector<128x1xf32>
    %21 = tpu.transpose %20, [1, 0] : vector<128x1xf32> -> vector<1x128xf32>
    %22 = vector.broadcast %19 : vector<128x1xf32> to vector<128x128xf32>
    %23 = vector.broadcast %21 : vector<1x128xf32> to vector<128x128xf32>
    %24 = arith.addf %22, %23 : vector<128x128xf32>
    %cst_11 = arith.constant 0.000000e+00 : f32
    %25 = vector.broadcast %cst_11 : f32 to vector<128x128xf32>
    %26 = arith.cmpf oge, %24, %25 : vector<128x128xf32>
    %cst_12 = arith.constant 2.000000e-01 : f32
    %27 = vector.broadcast %cst_12 : f32 to vector<128x128xf32>
    %28 = arith.mulf %27, %24 : vector<128x128xf32>
    %29 = arith.select %26, %24, %28 : vector<128x128xi1>, vector<128x128xf32>
    %cst_13 = arith.constant 0xFF800000 : f32
    %30 = vector.broadcast %cst_13 : f32 to vector<128x128xf32>
    %31 = arith.select %5, %30, %29 : vector<128x128xi1>, vector<128x128xf32>
    %cst_14 = arith.constant dense<0xFF800000> : vector<128xf32>
    %32 = vector.multi_reduction <maximumf>, %31, %cst_14 [1] : vector<128x128xf32> to vector<128xf32>
    %33 = vector.shape_cast %32 : vector<128xf32> to vector<128x1xf32>
    %34 = vector.broadcast %33 : vector<128x1xf32> to vector<128x128xf32>
    %35 = arith.subf %31, %34 : vector<128x128xf32>
    %36 = math.exp %35 : vector<128x128xf32>
    %cst_15 = arith.constant dense<0.000000e+00> : vector<128xf32>
    %37 = vector.multi_reduction <add>, %36, %cst_15 [1] : vector<128x128xf32> to vector<128xf32>
    %38 = vector.shape_cast %37 : vector<128xf32> to vector<128x1xf32>
    %39 = tpu.reciprocal %38 {approx = true} : vector<128x1xf32> -> vector<128x1xf32>
    %40 = vector.broadcast %39 : vector<128x1xf32> to vector<128x128xf32>
    %41 = arith.mulf %36, %40 : vector<128x128xf32>
    %42 = arith.addf %41, %18 : vector<128x128xf32>
    %43 = math.exp %42 : vector<128x128xf32>
    %cst_16 = arith.constant dense<0.000000e+00> : vector<128xf32>
    %44 = vector.multi_reduction <add>, %43, %cst_16 [1] : vector<128x128xf32> to vector<128xf32>
    %45 = vector.shape_cast %44 : vector<128xf32> to vector<128x1xf32>
    %cst_17 = arith.constant 5.100000e+01 : f32
    %46 = vector.broadcast %cst_17 : f32 to vector<128x1xf32>
    %47 = arith.subf %45, %46 : vector<128x1xf32>
    %48 = tpu.reciprocal %47 {approx = true} : vector<128x1xf32> -> vector<128x1xf32>
    %49 = vector.broadcast %48 : vector<128x1xf32> to vector<128x128xf32>
    %50 = arith.mulf %43, %49 : vector<128x128xf32>
    %cst_18 = arith.constant dense<0.000000e+00> : vector<128x128xf32>
    %51 = tpu.matmul %50, %2, %cst_18 {dimension_numbers = #tpu.dot_dimension_numbers<[1], [0], [0], [1], [0, 0, 1, 1], [], []>} : vector<128x128xf32>, vector<128x128xf32>, vector<128x128xf32> -> vector<128x128xf32>
    %c0_19 = arith.constant 0 : index
    %c0_20 = arith.constant 0 : index
    %52 = vector.load %arg4[%c0_19, %c0_20] : memref<128x128xf32, #tpu.memory_space<vmem>>, vector<128x128xf32>
    tpu.vector_store %arg4[%c0_19, %c0_20], %51 {strides = array<i32>} : memref<128x128xf32, #tpu.memory_space<vmem>>, vector<128x128xf32>,
    return
  }
}

</mosaic_0001>

<llo_original>
// kernel: adsf_forward.1
$region0: #{adsf_forward.1}
  #allocation0 [shape = 'u32[]', space=smem, size = 0x4, offset = 0x4, fixed_abs, tag = 'smem constant byte address 0x4 - core index']
  #allocation1 [shape = 'u32[144,128]{1,0:T(1,128)}', space=vmem, size = 0x12000, scoped, tag = 'internal scratch']
  %s0 = inlined_call_operand.vmem [shape: f32[128,32], index: 0, kind: input, shape index: {}]
  %s1 = inlined_call_operand.vmem [shape: f32[32,128], index: 1, kind: input, shape index: {}]
  %s2 = inlined_call_operand.vmem [shape: f32[128,128], index: 2, kind: input, shape index: {}]
  %s3 = inlined_call_operand.vmem [shape: f32[128,128], index: 3, kind: input, shape index: {}]
  %s4 = inlined_call_operand.vmem [shape: f32[128,128], index: 4, kind: output, shape index: {}]
  %s5 = sld [smem:[#allocation0]]
  $region26: #{adsf_forward.1} parent=0
    _
  %s7 = ssub.s32 1, %s5
  %s8 = scalar_select 0, %s7, %s5
  // Predicated region
  $region2: #{adsf_forward.1} parent=0 // pred_check
    _
  $region3: #{adsf_forward.1} parent=0 // pred_check_branch
    %10 = sbr.rel (0) target = $region5
  $region4: #{adsf_forward.1} parent=0 // pred_region
    _
  $region5: #{adsf_forward.1} parent=0 // pred_fallthru
    _
  // Predicated region
  $region6: #{adsf_forward.1} parent=0 // pred_check
    _
  $region7: #{adsf_forward.1} parent=0 // pred_check_branch
    %12 = sbr.rel (0) target = $region9
  $region8: #{adsf_forward.1} parent=0 // pred_region
    _
  $region9: #{adsf_forward.1} parent=0 // pred_fallthru
    _
  // Predicated region
  $region10: #{adsf_forward.1} parent=0 // pred_check
    _
  $region11: #{adsf_forward.1} parent=0 // pred_check_branch
    %14 = sbr.rel (0) target = $region13
  $region12: #{adsf_forward.1} parent=0 // pred_region
    _
  $region13: #{adsf_forward.1} parent=0 // pred_fallthru
    _
  // Predicated region
  $region14: #{adsf_forward.1} parent=0 // pred_check
    _
  $region15: #{adsf_forward.1} parent=0 // pred_check_branch
    %16 = sbr.rel (0) target = $region17
  $region16: #{adsf_forward.1} parent=0 // pred_region
    _
  $region17: #{adsf_forward.1} parent=0 // pred_fallthru
    _
  %v17 = vld [vmem:[%s0] sm:$0xff]
  %v18 = vld [vmem:[%s0 + $0x8] sm:$0xff]
  %v19 = vld [vmem:[%s0 + $0x10] sm:$0xff]
  %v20 = vld [vmem:[%s0 + $0x18] sm:$0xff]
  %v21 = vld [vmem:[%s0 + $0x20] sm:$0xff]
  %v22 = vld [vmem:[%s0 + $0x28] sm:$0xff]
  %v23 = vld [vmem:[%s0 + $0x30] sm:$0xff]
  %v24 = vld [vmem:[%s0 + $0x38] sm:$0xff]
  %v25 = vld [vmem:[%s0 + $0x40] sm:$0xff]
  %v26 = vld [vmem:[%s0 + $0x48] sm:$0xff]
  %v27 = vld [vmem:[%s0 + $0x50] sm:$0xff]
  %v28 = vld [vmem:[%s0 + $0x58] sm:$0xff]
  %v29 = vld [vmem:[%s0 + $0x60] sm:$0xff]
  %v30 = vld [vmem:[%s0 + $0x68] sm:$0xff]
  %v31 = vld [vmem:[%s0 + $0x70] sm:$0xff]
  %v32 = vld [vmem:[%s0 + $0x78] sm:$0xff]
  %v33 = vld [vmem:[%s1] sm:$0xff]
  %v34 = vld [vmem:[%s1 + $0x8] sm:$0xff]
  %v35 = vld [vmem:[%s1 + $0x10] sm:$0xff]
  %v36 = vld [vmem:[%s1 + $0x18] sm:$0xff]
  %vm37 = vcmask 261120
  %v39 = vsel %vm37, %v17, 0
  %v42 = vsel %vm37, %v18, 0
  %v45 = vsel %vm37, %v19, 0
  %v48 = vsel %vm37, %v20, 0
  %v51 = vsel %vm37, %v21, 0
  %v54 = vsel %vm37, %v22, 0
  %v57 = vsel %vm37, %v23, 0
  %v60 = vsel %vm37, %v24, 0
  %v63 = vsel %vm37, %v25, 0
  %v66 = vsel %vm37, %v26, 0
  %v69 = vsel %vm37, %v27, 0
  %v72 = vsel %vm37, %v28, 0
  %v75 = vsel %vm37, %v29, 0
  %v78 = vsel %vm37, %v30, 0
  %v81 = vsel %vm37, %v31, 0
  %v84 = vsel %vm37, %v32, 0
  %86 = vmatprep.subr.mxu0 0.0
  %87 = vmatpush1.msra.mxu0 %v33
  %88 = vmatprep.subr.mxu0 0.0
  %89 = vmatpush1.msra.mxu0 %v34
  %90 = vmatprep.subr.mxu0 0.0
  %91 = vmatpush1.msra.mxu0 %v35
  %92 = vmatprep.subr.mxu0 0.0
  %93 = vmatpush1.msra.mxu0 %v36
  %94 = vmatprep.subr.mxu0 0.0
  %95 = vmatpush1.msra.mxu0 0.0
  %96 = vmatprep.subr.mxu0 0.0
  %97 = vmatpush1.msra.mxu0 0.0
  %98 = vmatprep.subr.mxu0 0.0
  %99 = vmatpush1.msra.mxu0 0.0
  %100 = vmatprep.subr.mxu0 0.0
  %101 = vmatpush1.msra.mxu0 0.0
  %102 = vmatprep.subr.mxu0 0.0
  %103 = vmatpush1.msra.mxu0 0.0
  %104 = vmatprep.subr.mxu0 0.0
  %105 = vmatpush1.msra.mxu0 0.0
  %106 = vmatprep.subr.mxu0 0.0
  %107 = vmatpush1.msra.mxu0 0.0
  %108 = vmatprep.subr.mxu0 0.0
  %109 = vmatpush1.msra.mxu0 0.0
  %110 = vmatprep.subr.mxu0 0.0
  %111 = vmatpush1.msra.mxu0 0.0
  %112 = vmatprep.subr.mxu0 0.0
  %113 = vmatpush1.msra.mxu0 0.0
  %114 = vmatprep.subr.mxu0 0.0
  %115 = vmatpush1.msra.mxu0 0.0
  %116 = vmatprep.subr.mxu0 0.0
  %117 = vmatpush1.msra.mxu0 0.0
  %118 = vmatprep.subr.mxu0 0.0
  %119 = vmatpush1.msra.mxu0 0.0
  %120 = vmatprep.subr.mxu0 0.0
  %121 = vmatpush1.msra.mxu0 0.0
  %122 = vmatprep.subr.mxu0 0.0
  %123 = vmatpush1.msra.mxu0 0.0
  %124 = vmatprep.subr.mxu0 0.0
  %125 = vmatpush1.msra.mxu0 0.0
  %126 = vmatprep.subr.mxu0 0.0
  %127 = vmatpush1.msra.mxu0 0.0
  %128 = vmatprep.subr.mxu0 0.0
  %129 = vmatpush1.msra.mxu0 0.0
  %130 = vmatprep.subr.mxu0 0.0
  %131 = vmatpush1.msra.mxu0 0.0
  %132 = vmatprep.subr.mxu0 0.0
  %133 = vmatpush1.msra.mxu0 0.0
  %134 = vmatprep.subr.mxu0 0.0
  %135 = vmatpush1.msra.mxu0 0.0
  %136 = vmatprep.subr.mxu0 0.0
  %137 = vmatpush1.msra.mxu0 0.0
  %138 = vmatprep.subr.mxu0 0.0
  %139 = vmatpush1.msra.mxu0 0.0
  %140 = vmatprep.subr.mxu0 0.0
  %141 = vmatpush1.msra.mxu0 0.0
  %142 = vmatprep.subr.mxu0 0.0
  %143 = vmatpush1.msra.mxu0 0.0
  %144 = vmatprep.subr.mxu0 0.0
  %145 = vmatpush1.msra.mxu0 0.0
  %146 = vmatprep.subr.mxu0 0.0
  %147 = vmatpush1.msra.mxu0 0.0
  %148 = vmatprep.subr.mxu0 0.0
  %149 = vmatpush1.msra.mxu0 0.0
  %150 = vmatprep.mubr.f32.mxu0 0.0
  %151 = vmatmul.mubr.f32.gmra.mrb[0].mxu0 %v39
  %v152 = vpop.f32.mrb[0].mxu0
  %v153 = vadd.f32 0.0, %v152
  %v154 = vpop.f32.mrb[0].mxu0
  %155 = vmatprep.mubr.f32.mxu0 0.0
  %156 = vmatmul.mubr.f32.gmra.mrb[0].mxu0 %v42
  %v157 = vpop.f32.mrb[0].mxu0
  %v158 = vadd.f32 0.0, %v157
  %v159 = vpop.f32.mrb[0].mxu0
  %160 = vmatprep.mubr.f32.mxu0 0.0
  %161 = vmatmul.mubr.f32.gmra.mrb[0].mxu0 %v45
  %v162 = vpop.f32.mrb[0].mxu0
  %v163 = vadd.f32 0.0, %v162
  %v164 = vpop.f32.mrb[0].mxu0
  %165 = vmatprep.mubr.f32.mxu0 0.0
  %166 = vmatmul.mubr.f32.gmra.mrb[0].mxu0 %v48
  %v167 = vpop.f32.mrb[0].mxu0
  %v168 = vadd.f32 0.0, %v167
  %v169 = vpop.f32.mrb[0].mxu0
  %170 = vmatprep.mubr.f32.mxu0 0.0
  %171 = vmatmul.mubr.f32.gmra.mrb[0].mxu0 %v51
  %v172 = vpop.f32.mrb[0].mxu0
  %v173 = vadd.f32 0.0, %v172
  %v174 = vpop.f32.mrb[0].mxu0
  %175 = vmatprep.mubr.f32.mxu0 0.0
  %176 = vmatmul.mubr.f32.gmra.mrb[0].mxu0 %v54
  %v177 = vpop.f32.mrb[0].mxu0
  %v178 = vadd.f32 0.0, %v177
  %v179 = vpop.f32.mrb[0].mxu0
  %180 = vmatprep.mubr.f32.mxu0 0.0
  %181 = vmatmul.mubr.f32.gmra.mrb[0].mxu0 %v57
  %v182 = vpop.f32.mrb[0].mxu0
  %v183 = vadd.f32 0.0, %v182
  %v184 = vpop.f32.mrb[0].mxu0
  %185 = vmatprep.mubr.f32.mxu0 0.0
  %186 = vmatmul.mubr.f32.gmra.mrb[0].mxu0 %v60
  %v187 = vpop.f32.mrb[0].mxu0
  %v188 = vadd.f32 0.0, %v187
  %v189 = vpop.f32.mrb[0].mxu0
  %190 = vmatprep.mubr.f32.mxu0 0.0
  %191 = vmatmul.mubr.f32.gmra.mrb[0].mxu0 %v63
  %v192 = vpop.f32.mrb[0].mxu0
  %v193 = vadd.f32 0.0, %v192
  %v194 = vpop.f32.mrb[0].mxu0
  %195 = vmatprep.mubr.f32.mxu0 0.0
  %196 = vmatmul.mubr.f32.gmra.mrb[0].mxu0 %v66
  %v197 = vpop.f32.mrb[0].mxu0
  %v198 = vadd.f32 0.0, %v197
  %v199 = vpop.f32.mrb[0].mxu0
  %200 = vmatprep.mubr.f32.mxu0 0.0
  %201 = vmatmul.mubr.f32.gmra.mrb[0].mxu0 %v69
  %v202 = vpop.f32.mrb[0].mxu0
  %v203 = vadd.f32 0.0, %v202
  %v204 = vpop.f32.mrb[0].mxu0
  %205 = vmatprep.mubr.f32.mxu0 0.0
  %206 = vmatmul.mubr.f32.gmra.mrb[0].mxu0 %v72
  %v207 = vpop.f32.mrb[0].mxu0
  %v208 = vadd.f32 0.0, %v207
  %v209 = vpop.f32.mrb[0].mxu0
  %210 = vmatprep.mubr.f32.mxu0 0.0
  %211 = vmatmul.mubr.f32.gmra.mrb[0].mxu0 %v75
  %v212 = vpop.f32.mrb[0].mxu0
  %v213 = vadd.f32 0.0, %v212
  %v214 = vpop.f32.mrb[0].mxu0
  %215 = vmatprep.mubr.f32.mxu0 0.0
  %216 = vmatmul.mubr.f32.gmra.mrb[0].mxu0 %v78
  %v217 = vpop.f32.mrb[0].mxu0
  %v218 = vadd.f32 0.0, %v217
  %v219 = vpop.f32.mrb[0].mxu0
  %220 = vmatprep.mubr.f32.mxu0 0.0
  %221 = vmatmul.mubr.f32.gmra.mrb[0].mxu0 %v81
  %v222 = vpop.f32.mrb[0].mxu0
  %v223 = vadd.f32 0.0, %v222
  %v224 = vpop.f32.mrb[0].mxu0
  %225 = vmatprep.mubr.f32.mxu0 0.0
  %226 = vmatmul.mubr.f32.gmra.mrb[0].mxu0 %v84
  %v227 = vpop.f32.mrb[0].mxu0
  %v228 = vadd.f32 0.0, %v227
  %v229 = vpop.f32.mrb[0].mxu0
  %230 = vdwg.mxu0
  %v231 = vld [vmem:[%s2] sm:$0xff]
  %v232 = vld [vmem:[%s2 + $0x8] sm:$0xff]
  %v233 = vld [vmem:[%s2 + $0x10] sm:$0xff]
  %v234 = vld [vmem:[%s2 + $0x18] sm:$0xff]
  %v235 = vld [vmem:[%s2 + $0x20] sm:$0xff]
  %v236 = vld [vmem:[%s2 + $0x28] sm:$0xff]
  %v237 = vld [vmem:[%s2 + $0x30] sm:$0xff]
  %v238 = vld [vmem:[%s2 + $0x38] sm:$0xff]
  %v239 = vld [vmem:[%s2 + $0x40] sm:$0xff]
  %v240 = vld [vmem:[%s2 + $0x48] sm:$0xff]
  %v241 = vld [vmem:[%s2 + $0x50] sm:$0xff]
  %v242 = vld [vmem:[%s2 + $0x58] sm:$0xff]
  %v243 = vld [vmem:[%s2 + $0x60] sm:$0xff]
  %v244 = vld [vmem:[%s2 + $0x68] sm:$0xff]
  %v245 = vld [vmem:[%s2 + $0x70] sm:$0xff]
  %v246 = vld [vmem:[%s2 + $0x78] sm:$0xff]
  %vm247 = vcmp.eq.f32.partialorder %v231, 0.0
  %vm248 = vcmp.eq.f32.partialorder %v232, 0.0
  %vm249 = vcmp.eq.f32.partialorder %v233, 0.0
  %vm250 = vcmp.eq.f32.partialorder %v234, 0.0
  %vm251 = vcmp.eq.f32.partialorder %v235, 0.0
  %vm252 = vcmp.eq.f32.partialorder %v236, 0.0
  %vm253 = vcmp.eq.f32.partialorder %v237, 0.0
  %vm254 = vcmp.eq.f32.partialorder %v238, 0.0
  %vm255 = vcmp.eq.f32.partialorder %v239, 0.0
  %vm256 = vcmp.eq.f32.partialorder %v240, 0.0
  %vm257 = vcmp.eq.f32.partialorder %v241, 0.0
  %vm258 = vcmp.eq.f32.partialorder %v242, 0.0
  %vm259 = vcmp.eq.f32.partialorder %v243, 0.0
  %vm260 = vcmp.eq.f32.partialorder %v244, 0.0
  %vm261 = vcmp.eq.f32.partialorder %v245, 0.0
  %vm262 = vcmp.eq.f32.partialorder %v246, 0.0
  %v263 = vld [vmem:[%s3] sm:$0xff]
  %v264 = vld [vmem:[%s3 + $0x8] sm:$0xff]
  %v265 = vld [vmem:[%s3 + $0x10] sm:$0xff]
  %v266 = vld [vmem:[%s3 + $0x18] sm:$0xff]
  %v267 = vld [vmem:[%s3 + $0x20] sm:$0xff]
  %v268 = vld [vmem:[%s3 + $0x28] sm:$0xff]
  %v269 = vld [vmem:[%s3 + $0x30] sm:$0xff]
  %v270 = vld [vmem:[%s3 + $0x38] sm:$0xff]
  %v271 = vld [vmem:[%s3 + $0x40] sm:$0xff]
  %v272 = vld [vmem:[%s3 + $0x48] sm:$0xff]
  %v273 = vld [vmem:[%s3 + $0x50] sm:$0xff]
  %v274 = vld [vmem:[%s3 + $0x58] sm:$0xff]
  %v275 = vld [vmem:[%s3 + $0x60] sm:$0xff]
  %v276 = vld [vmem:[%s3 + $0x68] sm:$0xff]
  %v277 = vld [vmem:[%s3 + $0x70] sm:$0xff]
  %v278 = vld [vmem:[%s3 + $0x78] sm:$0xff]
  %v279 = vsel %vm247, -inf, %v263
  %v280 = vsel %vm248, -inf, %v264
  %v281 = vsel %vm249, -inf, %v265
  %v282 = vsel %vm250, -inf, %v266
  %v283 = vsel %vm251, -inf, %v267
  %v284 = vsel %vm252, -inf, %v268
  %v285 = vsel %vm253, -inf, %v269
  %v286 = vsel %vm254, -inf, %v270
  %v287 = vsel %vm255, -inf, %v271
  %v288 = vsel %vm256, -inf, %v272
  %v289 = vsel %vm257, -inf, %v273
  %v290 = vsel %vm258, -inf, %v274
  %v291 = vsel %vm259, -inf, %v275
  %v292 = vsel %vm260, -inf, %v276
  %v293 = vsel %vm261, -inf, %v277
  %v294 = vsel %vm262, -inf, %v278
  %295 = vmax.xlane.f32.xlu0 %v279
  %v296 = vpop.xlane.xlu0 %295
  %297 = vmax.xlane.f32.xlu0 %v280
  %v298 = vpop.xlane.xlu0 %297
  %299 = vmax.xlane.f32.xlu0 %v281
  %v300 = vpop.xlane.xlu0 %299
  %301 = vmax.xlane.f32.xlu0 %v282
  %v302 = vpop.xlane.xlu0 %301
  %303 = vmax.xlane.f32.xlu0 %v283
  %v304 = vpop.xlane.xlu0 %303
  %305 = vmax.xlane.f32.xlu0 %v284
  %v306 = vpop.xlane.xlu0 %305
  %307 = vmax.xlane.f32.xlu0 %v285
  %v308 = vpop.xlane.xlu0 %307
  %309 = vmax.xlane.f32.xlu0 %v286
  %v310 = vpop.xlane.xlu0 %309
  %311 = vmax.xlane.f32.xlu0 %v287
  %v312 = vpop.xlane.xlu0 %311
  %313 = vmax.xlane.f32.xlu0 %v288
  %v314 = vpop.xlane.xlu0 %313
  %315 = vmax.xlane.f32.xlu0 %v289
  %v316 = vpop.xlane.xlu0 %315
  %317 = vmax.xlane.f32.xlu0 %v290
  %v318 = vpop.xlane.xlu0 %317
  %319 = vmax.xlane.f32.xlu0 %v291
  %v320 = vpop.xlane.xlu0 %319
  %321 = vmax.xlane.f32.xlu0 %v292
  %v322 = vpop.xlane.xlu0 %321
  %323 = vmax.xlane.f32.xlu0 %v293
  %v324 = vpop.xlane.xlu0 %323
  %325 = vmax.xlane.f32.xlu0 %v294
  %v326 = vpop.xlane.xlu0 %325
  %v327 = vsub.f32 %v279, %v296
  %v328 = vsub.f32 %v280, %v298
  %v329 = vsub.f32 %v281, %v300
  %v330 = vsub.f32 %v282, %v302
  %v331 = vsub.f32 %v283, %v304
  %v332 = vsub.f32 %v284, %v306
  %v333 = vsub.f32 %v285, %v308
  %v334 = vsub.f32 %v286, %v310
  %v335 = vsub.f32 %v287, %v312
  %v336 = vsub.f32 %v288, %v314
  %v337 = vsub.f32 %v289, %v316
  %v338 = vsub.f32 %v290, %v318
  %v339 = vsub.f32 %v291, %v320
  %v340 = vsub.f32 %v292, %v322
  %v341 = vsub.f32 %v293, %v324
  %v342 = vsub.f32 %v294, %v326
  %v343 = vmul.f32 %v327, 1.442695
  %v344 = vpow.pop %v343
  %v345 = vmul.f32 %v328, 1.442695
  %v346 = vpow.pop %v345
  %v347 = vmul.f32 %v329, 1.442695
  %v348 = vpow.pop %v347
  %v349 = vmul.f32 %v330, 1.442695
  %v350 = vpow.pop %v349
  %v351 = vmul.f32 %v331, 1.442695
  %v352 = vpow.pop %v351
  %v353 = vmul.f32 %v332, 1.442695
  %v354 = vpow.pop %v353
  %v355 = vmul.f32 %v333, 1.442695
  %v356 = vpow.pop %v355
  %v357 = vmul.f32 %v334, 1.442695
  %v358 = vpow.pop %v357
  %v359 = vmul.f32 %v335, 1.442695
  %v360 = vpow.pop %v359
  %v361 = vmul.f32 %v336, 1.442695
  %v362 = vpow.pop %v361
  %v363 = vmul.f32 %v337, 1.442695
  %v364 = vpow.pop %v363
  %v365 = vmul.f32 %v338, 1.442695
  %v366 = vpow.pop %v365
  %v367 = vmul.f32 %v339, 1.442695
  %v368 = vpow.pop %v367
  %v369 = vmul.f32 %v340, 1.442695
  %v370 = vpow.pop %v369
  %v371 = vmul.f32 %v341, 1.442695
  %v372 = vpow.pop %v371
  %v373 = vmul.f32 %v342, 1.442695
  %v374 = vpow.pop %v373
  %375 = vadd.xlane.f32.xlu0 %v344
  %v376 = vpop.xlane.xlu0 %375
  %377 = vadd.xlane.f32.xlu0 %v346
  %v378 = vpop.xlane.xlu0 %377
  %379 = vadd.xlane.f32.xlu0 %v348
  %v380 = vpop.xlane.xlu0 %379
  %381 = vadd.xlane.f32.xlu0 %v350
  %v382 = vpop.xlane.xlu0 %381
  %383 = vadd.xlane.f32.xlu0 %v352
  %v384 = vpop.xlane.xlu0 %383
  %385 = vadd.xlane.f32.xlu0 %v354
  %v386 = vpop.xlane.xlu0 %385
  %387 = vadd.xlane.f32.xlu0 %v356
  %v388 = vpop.xlane.xlu0 %387
  %389 = vadd.xlane.f32.xlu0 %v358
  %v390 = vpop.xlane.xlu0 %389
  %391 = vadd.xlane.f32.xlu0 %v360
  %v392 = vpop.xlane.xlu0 %391
  %393 = vadd.xlane.f32.xlu0 %v362
  %v394 = vpop.xlane.xlu0 %393
  %395 = vadd.xlane.f32.xlu0 %v364
  %v396 = vpop.xlane.xlu0 %395
  %397 = vadd.xlane.f32.xlu0 %v366
  %v398 = vpop.xlane.xlu0 %397
  %399 = vadd.xlane.f32.xlu0 %v368
  %v400 = vpop.xlane.xlu0 %399
  %401 = vadd.xlane.f32.xlu0 %v370
  %v402 = vpop.xlane.xlu0 %401
  %403 = vadd.xlane.f32.xlu0 %v372
  %v404 = vpop.xlane.xlu0 %403
  %405 = vadd.xlane.f32.xlu0 %v374
  %v406 = vpop.xlane.xlu0 %405
  %v407 = vrcp.pop %v376
  %v408 = vrcp.pop %v378
  %v409 = vrcp.pop %v380
  %v410 = vrcp.pop %v382
  %v411 = vrcp.pop %v384
  %v412 = vrcp.pop %v386
  %v413 = vrcp.pop %v388
  %v414 = vrcp.pop %v390
  %v415 = vrcp.pop %v392
  %v416 = vrcp.pop %v394
  %v417 = vrcp.pop %v396
  %v418 = vrcp.pop %v398
  %v419 = vrcp.pop %v400
  %v420 = vrcp.pop %v402
  %v421 = vrcp.pop %v404
  %v422 = vrcp.pop %v406
  %v423 = vmul.f32 %v344, %v407
  %v424 = vmul.f32 %v346, %v408
  %v425 = vmul.f32 %v348, %v409
  %v426 = vmul.f32 %v350, %v410
  %v427 = vmul.f32 %v352, %v411
  %v428 = vmul.f32 %v354, %v412
  %v429 = vmul.f32 %v356, %v413
  %v430 = vmul.f32 %v358, %v414
  %v431 = vmul.f32 %v360, %v415
  %v432 = vmul.f32 %v362, %v416
  %v433 = vmul.f32 %v364, %v417
  %v434 = vmul.f32 %v366, %v418
  %v435 = vmul.f32 %v368, %v419
  %v436 = vmul.f32 %v370, %v420
  %v437 = vmul.f32 %v372, %v421
  %v438 = vmul.f32 %v374, %v422
  %455 = vrot.lane.b32.xlu0 %v153, 47
  %v456 = vpop.permute.xlu0 %455
  %457 = vrot.lane.b32.xlu0 %v158, 47
  %v458 = vpop.permute.xlu0 %457
  %459 = vrot.lane.b32.xlu0 %v163, 47
  %v460 = vpop.permute.xlu0 %459
  %461 = vrot.lane.b32.xlu0 %v168, 47
  %v462 = vpop.permute.xlu0 %461
  %463 = vrot.lane.b32.xlu0 %v173, 47
  %v464 = vpop.permute.xlu0 %463
  %465 = vrot.lane.b32.xlu0 %v178, 47
  %v466 = vpop.permute.xlu0 %465
  %467 = vrot.lane.b32.xlu0 %v183, 47
  %v468 = vpop.permute.xlu0 %467
  %469 = vrot.lane.b32.xlu0 %v188, 47
  %v470 = vpop.permute.xlu0 %469
  %471 = vrot.lane.b32.xlu0 %v193, 47
  %v472 = vpop.permute.xlu0 %471
  %473 = vrot.lane.b32.xlu0 %v198, 47
  %v474 = vpop.permute.xlu0 %473
  %475 = vrot.lane.b32.xlu0 %v203, 47
  %v476 = vpop.permute.xlu0 %475
  %477 = vrot.lane.b32.xlu0 %v208, 47
  %v478 = vpop.permute.xlu0 %477
  %479 = vrot.lane.b32.xlu0 %v213, 47
  %v480 = vpop.permute.xlu0 %479
  %481 = vrot.lane.b32.xlu0 %v218, 47
  %v482 = vpop.permute.xlu0 %481
  %483 = vrot.lane.b32.xlu0 %v223, 47
  %v484 = vpop.permute.xlu0 %483
  %485 = vrot.lane.b32.xlu0 %v228, 47
  %v486 = vpop.permute.xlu0 %485
  %503 = vxpose.xlu0.b32.start [1/16] %v456, 128
  %504 = vxpose.xlu0.b32.cont [2/16] %v458, 128
  %505 = vxpose.xlu0.b32.cont [3/16] %v460, 128
  %506 = vxpose.xlu0.b32.cont [4/16] %v462, 128
  %507 = vxpose.xlu0.b32.cont [5/16] %v464, 128
  %508 = vxpose.xlu0.b32.cont [6/16] %v466, 128
  %509 = vxpose.xlu0.b32.cont [7/16] %v468, 128
  %510 = vxpose.xlu0.b32.cont [8/16] %v470, 128
  %511 = vxpose.xlu0.b32.cont [9/16] %v472, 128
  %512 = vxpose.xlu0.b32.cont [10/16] %v474, 128
  %513 = vxpose.xlu0.b32.cont [11/16] %v476, 128
  %514 = vxpose.xlu0.b32.cont [12/16] %v478, 128
  %515 = vxpose.xlu0.b32.cont [13/16] %v480, 128
  %516 = vxpose.xlu0.b32.cont [14/16] %v482, 128
  %517 = vxpose.xlu0.b32.cont [15/16] %v484, 128
  %518 = vxpose.xlu0.b32.end [16/16] %v486, 128
  %v519 = vpop.trf.xlu0
  %v520 = vpop.trf.xlu0
  %v521 = vpop.trf.xlu0
  %v522 = vpop.trf.xlu0
  %v523 = vpop.trf.xlu0
  %v524 = vpop.trf.xlu0
  %v525 = vpop.trf.xlu0
  %v526 = vpop.trf.xlu0
  %v527 = vpop.trf.xlu0
  %v528 = vpop.trf.xlu0
  %v529 = vpop.trf.xlu0
  %v530 = vpop.trf.xlu0
  %v531 = vpop.trf.xlu0
  %v532 = vpop.trf.xlu0
  %v533 = vpop.trf.xlu0
  %v534 = vpop.trf.xlu0
  %535 = vset.pattern.permute.xlu0 80
  %536 = vperm.xlu0 %535, %v153
  %v537 = vpop.permute.xlu0 %536
  %539 = vset.pattern.permute.xlu0 80
  %540 = vperm.xlu0 %539, %v158
  %v541 = vpop.permute.xlu0 %540
  %543 = vset.pattern.permute.xlu0 80
  %544 = vperm.xlu0 %543, %v163
  %v545 = vpop.permute.xlu0 %544
  %547 = vset.pattern.permute.xlu0 80
  %548 = vperm.xlu0 %547, %v168
  %v549 = vpop.permute.xlu0 %548
  %551 = vset.pattern.permute.xlu0 80
  %552 = vperm.xlu0 %551, %v173
  %v553 = vpop.permute.xlu0 %552
  %555 = vset.pattern.permute.xlu0 80
  %556 = vperm.xlu0 %555, %v178
  %v557 = vpop.permute.xlu0 %556
  %559 = vset.pattern.permute.xlu0 80
  %560 = vperm.xlu0 %559, %v183
  %v561 = vpop.permute.xlu0 %560
  %563 = vset.pattern.permute.xlu0 80
  %564 = vperm.xlu0 %563, %v188
  %v565 = vpop.permute.xlu0 %564
  %567 = vset.pattern.permute.xlu0 80
  %568 = vperm.xlu0 %567, %v193
  %v569 = vpop.permute.xlu0 %568
  %571 = vset.pattern.permute.xlu0 80
  %572 = vperm.xlu0 %571, %v198
  %v573 = vpop.permute.xlu0 %572
  %575 = vset.pattern.permute.xlu0 80
  %576 = vperm.xlu0 %575, %v203
  %v577 = vpop.permute.xlu0 %576
  %579 = vset.pattern.permute.xlu0 80
  %580 = vperm.xlu0 %579, %v208
  %v581 = vpop.permute.xlu0 %580
  %583 = vset.pattern.permute.xlu0 80
  %584 = vperm.xlu0 %583, %v213
  %v585 = vpop.permute.xlu0 %584
  %587 = vset.pattern.permute.xlu0 80
  %588 = vperm.xlu0 %587, %v218
  %v589 = vpop.permute.xlu0 %588
  %591 = vset.pattern.permute.xlu0 80
  %592 = vperm.xlu0 %591, %v223
  %v593 = vpop.permute.xlu0 %592
  %595 = vset.pattern.permute.xlu0 80
  %596 = vperm.xlu0 %595, %v228
  %v597 = vpop.permute.xlu0 %596
  %v599 = vlaneseq
  %v600 = vshrl.u32 %v599, 7
  %v601 = vsub.s32 0, %v600
  %v602 = vrot.slane %v519, %v601
  %v603 = vadd.f32 %v537, %v602
  %v604 = vadd.f32 %v541, %v602
  %v605 = vadd.f32 %v545, %v602
  %v606 = vadd.f32 %v549, %v602
  %v607 = vadd.f32 %v553, %v602
  %v608 = vadd.f32 %v557, %v602
  %v609 = vadd.f32 %v561, %v602
  %v610 = vadd.f32 %v565, %v602
  %v611 = vadd.f32 %v569, %v602
  %v612 = vadd.f32 %v573, %v602
  %v613 = vadd.f32 %v577, %v602
  %v614 = vadd.f32 %v581, %v602
  %v615 = vadd.f32 %v585, %v602
  %v616 = vadd.f32 %v589, %v602
  %v617 = vadd.f32 %v593, %v602
  %v618 = vadd.f32 %v597, %v602
  %vm619 = vcmp.ge.f32.partialorder %v603, 0.0
  %vm620 = vcmp.ge.f32.partialorder %v604, 0.0
  %vm621 = vcmp.ge.f32.partialorder %v605, 0.0
  %vm622 = vcmp.ge.f32.partialorder %v606, 0.0
  %vm623 = vcmp.ge.f32.partialorder %v607, 0.0
  %vm624 = vcmp.ge.f32.partialorder %v608, 0.0
  %vm625 = vcmp.ge.f32.partialorder %v609, 0.0
  %vm626 = vcmp.ge.f32.partialorder %v610, 0.0
  %vm627 = vcmp.ge.f32.partialorder %v611, 0.0
  %vm628 = vcmp.ge.f32.partialorder %v612, 0.0
  %vm629 = vcmp.ge.f32.partialorder %v613, 0.0
  %vm630 = vcmp.ge.f32.partialorder %v614, 0.0
  %vm631 = vcmp.ge.f32.partialorder %v615, 0.0
  %vm632 = vcmp.ge.f32.partialorder %v616, 0.0
  %vm633 = vcmp.ge.f32.partialorder %v617, 0.0
  %vm634 = vcmp.ge.f32.partialorder %v618, 0.0
  %v635 = vmul.f32 %v603, 0.2
  %v636 = vmul.f32 %v604, 0.2
  %v637 = vmul.f32 %v605, 0.2
  %v638 = vmul.f32 %v606, 0.2
  %v639 = vmul.f32 %v607, 0.2
  %v640 = vmul.f32 %v608, 0.2
  %v641 = vmul.f32 %v609, 0.2
  %v642 = vmul.f32 %v610, 0.2
  %v643 = vmul.f32 %v611, 0.2
  %v644 = vmul.f32 %v612, 0.2
  %v645 = vmul.f32 %v613, 0.2
  %v646 = vmul.f32 %v614, 0.2
  %v647 = vmul.f32 %v615, 0.2
  %v648 = vmul.f32 %v616, 0.2
  %v649 = vmul.f32 %v617, 0.2
  %v650 = vmul.f32 %v618, 0.2
  %v651 = vsel %vm619, %v603, %v635
  %v652 = vsel %vm620, %v604, %v636
  %v653 = vsel %vm621, %v605, %v637
  %v654 = vsel %vm622, %v606, %v638
  %v655 = vsel %vm623, %v607, %v639
  %v656 = vsel %vm624, %v608, %v640
  %v657 = vsel %vm625, %v609, %v641
  %v658 = vsel %vm626, %v610, %v642
  %v659 = vsel %vm627, %v611, %v643
  %v660 = vsel %vm628, %v612, %v644
  %v661 = vsel %vm629, %v613, %v645
  %v662 = vsel %vm630, %v614, %v646
  %v663 = vsel %vm631, %v615, %v647
  %v664 = vsel %vm632, %v616, %v648
  %v665 = vsel %vm633, %v617, %v649
  %v666 = vsel %vm634, %v618, %v650
  %v667 = vsel %vm247, -inf, %v651
  %v668 = vsel %vm248, -inf, %v652
  %v669 = vsel %vm249, -inf, %v653
  %v670 = vsel %vm250, -inf, %v654
  %v671 = vsel %vm251, -inf, %v655
  %v672 = vsel %vm252, -inf, %v656
  %v673 = vsel %vm253, -inf, %v657
  %v674 = vsel %vm254, -inf, %v658
  %v675 = vsel %vm255, -inf, %v659
  %v676 = vsel %vm256, -inf, %v660
  %v677 = vsel %vm257, -inf, %v661
  %v678 = vsel %vm258, -inf, %v662
  %v679 = vsel %vm259, -inf, %v663
  %v680 = vsel %vm260, -inf, %v664
  %v681 = vsel %vm261, -inf, %v665
  %v682 = vsel %vm262, -inf, %v666
  %683 = vmax.xlane.f32.xlu0 %v667
  %v684 = vpop.xlane.xlu0 %683
  %685 = vmax.xlane.f32.xlu0 %v668
  %v686 = vpop.xlane.xlu0 %685
  %687 = vmax.xlane.f32.xlu0 %v669
  %v688 = vpop.xlane.xlu0 %687
  %689 = vmax.xlane.f32.xlu0 %v670
  %v690 = vpop.xlane.xlu0 %689
  %691 = vmax.xlane.f32.xlu0 %v671
  %v692 = vpop.xlane.xlu0 %691
  %693 = vmax.xlane.f32.xlu0 %v672
  %v694 = vpop.xlane.xlu0 %693
  %695 = vmax.xlane.f32.xlu0 %v673
  %v696 = vpop.xlane.xlu0 %695
  %697 = vmax.xlane.f32.xlu0 %v674
  %v698 = vpop.xlane.xlu0 %697
  %699 = vmax.xlane.f32.xlu0 %v675
  %v700 = vpop.xlane.xlu0 %699
  %701 = vmax.xlane.f32.xlu0 %v676
  %v702 = vpop.xlane.xlu0 %701
  %703 = vmax.xlane.f32.xlu0 %v677
  %v704 = vpop.xlane.xlu0 %703
  %705 = vmax.xlane.f32.xlu0 %v678
  %v706 = vpop.xlane.xlu0 %705
  %707 = vmax.xlane.f32.xlu0 %v679
  %v708 = vpop.xlane.xlu0 %707
  %709 = vmax.xlane.f32.xlu0 %v680
  %v710 = vpop.xlane.xlu0 %709
  %711 = vmax.xlane.f32.xlu0 %v681
  %v712 = vpop.xlane.xlu0 %711
  %713 = vmax.xlane.f32.xlu0 %v682
  %v714 = vpop.xlane.xlu0 %713
  %v715 = vsub.f32 %v667, %v684
  %v716 = vsub.f32 %v668, %v686
  %v717 = vsub.f32 %v669, %v688
  %v718 = vsub.f32 %v670, %v690
  %v719 = vsub.f32 %v671, %v692
  %v720 = vsub.f32 %v672, %v694
  %v721 = vsub.f32 %v673, %v696
  %v722 = vsub.f32 %v674, %v698
  %v723 = vsub.f32 %v675, %v700
  %v724 = vsub.f32 %v676, %v702
  %v725 = vsub.f32 %v677, %v704
  %v726 = vsub.f32 %v678, %v706
  %v727 = vsub.f32 %v679, %v708
  %v728 = vsub.f32 %v680, %v710
  %v729 = vsub.f32 %v681, %v712
  %v730 = vsub.f32 %v682, %v714
  %v731 = vmul.f32 %v715, 1.442695
  %v732 = vpow.pop %v731
  %v733 = vmul.f32 %v716, 1.442695
  %v734 = vpow.pop %v733
  %v735 = vmul.f32 %v717, 1.442695
  %v736 = vpow.pop %v735
  %v737 = vmul.f32 %v718, 1.442695
  %v738 = vpow.pop %v737
  %v739 = vmul.f32 %v719, 1.442695
  %v740 = vpow.pop %v739
  %v741 = vmul.f32 %v720, 1.442695
  %v742 = vpow.pop %v741
  %v743 = vmul.f32 %v721, 1.442695
  %v744 = vpow.pop %v743
  %v745 = vmul.f32 %v722, 1.442695
  %v746 = vpow.pop %v745
  %v747 = vmul.f32 %v723, 1.442695
  %v748 = vpow.pop %v747
  %v749 = vmul.f32 %v724, 1.442695
  %v750 = vpow.pop %v749
  %v751 = vmul.f32 %v725, 1.442695
  %v752 = vpow.pop %v751
  %v753 = vmul.f32 %v726, 1.442695
  %v754 = vpow.pop %v753
  %v755 = vmul.f32 %v727, 1.442695
  %v756 = vpow.pop %v755
  %v757 = vmul.f32 %v728, 1.442695
  %v758 = vpow.pop %v757
  %v759 = vmul.f32 %v729, 1.442695
  %v760 = vpow.pop %v759
  %v761 = vmul.f32 %v730, 1.442695
  %v762 = vpow.pop %v761
  %763 = vadd.xlane.f32.xlu0 %v732
  %v764 = vpop.xlane.xlu0 %763
  %765 = vadd.xlane.f32.xlu0 %v734
  %v766 = vpop.xlane.xlu0 %765
  %767 = vadd.xlane.f32.xlu0 %v736
  %v768 = vpop.xlane.xlu0 %767
  %769 = vadd.xlane.f32.xlu0 %v738
  %v770 = vpop.xlane.xlu0 %769
  %771 = vadd.xlane.f32.xlu0 %v740
  %v772 = vpop.xlane.xlu0 %771
  %773 = vadd.xlane.f32.xlu0 %v742
  %v774 = vpop.xlane.xlu0 %773
  %775 = vadd.xlane.f32.xlu0 %v744
  %v776 = vpop.xlane.xlu0 %775
  %777 = vadd.xlane.f32.xlu0 %v746
  %v778 = vpop.xlane.xlu0 %777
  %779 = vadd.xlane.f32.xlu0 %v748
  %v780 = vpop.xlane.xlu0 %779
  %781 = vadd.xlane.f32.xlu0 %v750
  %v782 = vpop.xlane.xlu0 %781
  %783 = vadd.xlane.f32.xlu0 %v752
  %v784 = vpop.xlane.xlu0 %783
  %785 = vadd.xlane.f32.xlu0 %v754
  %v786 = vpop.xlane.xlu0 %785
  %787 = vadd.xlane.f32.xlu0 %v756
  %v788 = vpop.xlane.xlu0 %787
  %789 = vadd.xlane.f32.xlu0 %v758
  %v790 = vpop.xlane.xlu0 %789
  %791 = vadd.xlane.f32.xlu0 %v760
  %v792 = vpop.xlane.xlu0 %791
  %793 = vadd.xlane.f32.xlu0 %v762
  %v794 = vpop.xlane.xlu0 %793
  %v795 = vrcp.pop %v764
  %v796 = vrcp.pop %v766
  %v797 = vrcp.pop %v768
  %v798 = vrcp.pop %v770
  %v799 = vrcp.pop %v772
  %v800 = vrcp.pop %v774
  %v801 = vrcp.pop %v776
  %v802 = vrcp.pop %v778
  %v803 = vrcp.pop %v780
  %v804 = vrcp.pop %v782
  %v805 = vrcp.pop %v784
  %v806 = vrcp.pop %v786
  %v807 = vrcp.pop %v788
  %v808 = vrcp.pop %v790
  %v809 = vrcp.pop %v792
  %v810 = vrcp.pop %v794
  %v811 = vmul.f32 %v732, %v795
  %v812 = vmul.f32 %v734, %v796
  %v813 = vmul.f32 %v736, %v797
  %v814 = vmul.f32 %v738, %v798
  %v815 = vmul.f32 %v740, %v799
  %v816 = vmul.f32 %v742, %v800
  %v817 = vmul.f32 %v744, %v801
  %v818 = vmul.f32 %v746, %v802
  %v819 = vmul.f32 %v748, %v803
  %v820 = vmul.f32 %v750, %v804
  %v821 = vmul.f32 %v752, %v805
  %v822 = vmul.f32 %v754, %v806
  %v823 = vmul.f32 %v756, %v807
  %v824 = vmul.f32 %v758, %v808
  %v825 = vmul.f32 %v760, %v809
  %v826 = vmul.f32 %v762, %v810
  %v827 = vadd.f32 %v811, %v423
  %v828 = vadd.f32 %v812, %v424
  %v829 = vadd.f32 %v813, %v425
  %v830 = vadd.f32 %v814, %v426
  %v831 = vadd.f32 %v815, %v427
  %v832 = vadd.f32 %v816, %v428
  %v833 = vadd.f32 %v817, %v429
  %v834 = vadd.f32 %v818, %v430
  %v835 = vadd.f32 %v819, %v431
  %v836 = vadd.f32 %v820, %v432
  %v837 = vadd.f32 %v821, %v433
  %v838 = vadd.f32 %v822, %v434
  %v839 = vadd.f32 %v823, %v435
  %v840 = vadd.f32 %v824, %v436
  %v841 = vadd.f32 %v825, %v437
  %v842 = vadd.f32 %v826, %v438
  %v843 = vmul.f32 %v827, 1.442695
  %v844 = vpow.pop %v843
  %v845 = vmul.f32 %v828, 1.442695
  %v846 = vpow.pop %v845
  %v847 = vmul.f32 %v829, 1.442695
  %v848 = vpow.pop %v847
  %v849 = vmul.f32 %v830, 1.442695
  %v850 = vpow.pop %v849
  %v851 = vmul.f32 %v831, 1.442695
  %v852 = vpow.pop %v851
  %v853 = vmul.f32 %v832, 1.442695
  %v854 = vpow.pop %v853
  %v855 = vmul.f32 %v833, 1.442695
  %v856 = vpow.pop %v855
  %v857 = vmul.f32 %v834, 1.442695
  %v858 = vpow.pop %v857
  %v859 = vmul.f32 %v835, 1.442695
  %v860 = vpow.pop %v859
  %v861 = vmul.f32 %v836, 1.442695
  %v862 = vpow.pop %v861
  %v863 = vmul.f32 %v837, 1.442695
  %v864 = vpow.pop %v863
  %v865 = vmul.f32 %v838, 1.442695
  %v866 = vpow.pop %v865
  %v867 = vmul.f32 %v839, 1.442695
  %v868 = vpow.pop %v867
  %v869 = vmul.f32 %v840, 1.442695
  %v870 = vpow.pop %v869
  %v871 = vmul.f32 %v841, 1.442695
  %v872 = vpow.pop %v871
  %v873 = vmul.f32 %v842, 1.442695
  %v874 = vpow.pop %v873
  %875 = vadd.xlane.f32.xlu0 %v844
  %v876 = vpop.xlane.xlu0 %875
  %877 = vadd.xlane.f32.xlu0 %v846
  %v878 = vpop.xlane.xlu0 %877
  %879 = vadd.xlane.f32.xlu0 %v848
  %v880 = vpop.xlane.xlu0 %879
  %881 = vadd.xlane.f32.xlu0 %v850
  %v882 = vpop.xlane.xlu0 %881
  %883 = vadd.xlane.f32.xlu0 %v852
  %v884 = vpop.xlane.xlu0 %883
  %885 = vadd.xlane.f32.xlu0 %v854
  %v886 = vpop.xlane.xlu0 %885
  %887 = vadd.xlane.f32.xlu0 %v856
  %v888 = vpop.xlane.xlu0 %887
  %889 = vadd.xlane.f32.xlu0 %v858
  %v890 = vpop.xlane.xlu0 %889
  %891 = vadd.xlane.f32.xlu0 %v860
  %v892 = vpop.xlane.xlu0 %891
  %893 = vadd.xlane.f32.xlu0 %v862
  %v894 = vpop.xlane.xlu0 %893
  %895 = vadd.xlane.f32.xlu0 %v864
  %v896 = vpop.xlane.xlu0 %895
  %897 = vadd.xlane.f32.xlu0 %v866
  %v898 = vpop.xlane.xlu0 %897
  %899 = vadd.xlane.f32.xlu0 %v868
  %v900 = vpop.xlane.xlu0 %899
  %901 = vadd.xlane.f32.xlu0 %v870
  %v902 = vpop.xlane.xlu0 %901
  %903 = vadd.xlane.f32.xlu0 %v872
  %v904 = vpop.xlane.xlu0 %903
  %905 = vadd.xlane.f32.xlu0 %v874
  %v906 = vpop.xlane.xlu0 %905
  %v907 = vsub.f32 %v876, 51.0
  %v908 = vsub.f32 %v878, 51.0
  %v909 = vsub.f32 %v880, 51.0
  %v910 = vsub.f32 %v882, 51.0
  %v911 = vsub.f32 %v884, 51.0
  %v912 = vsub.f32 %v886, 51.0
  %v913 = vsub.f32 %v888, 51.0
  %v914 = vsub.f32 %v890, 51.0
  %v915 = vsub.f32 %v892, 51.0
  %v916 = vsub.f32 %v894, 51.0
  %v917 = vsub.f32 %v896, 51.0
  %v918 = vsub.f32 %v898, 51.0
  %v919 = vsub.f32 %v900, 51.0
  %v920 = vsub.f32 %v902, 51.0
  %v921 = vsub.f32 %v904, 51.0
  %v922 = vsub.f32 %v906, 51.0
  %v923 = vrcp.pop %v907
  %v924 = vrcp.pop %v908
  %v925 = vrcp.pop %v909
  %v926 = vrcp.pop %v910
  %v927 = vrcp.pop %v911
  %v928 = vrcp.pop %v912
  %v929 = vrcp.pop %v913
  %v930 = vrcp.pop %v914
  %v931 = vrcp.pop %v915
  %v932 = vrcp.pop %v916
  %v933 = vrcp.pop %v917
  %v934 = vrcp.pop %v918
  %v935 = vrcp.pop %v919
  %v936 = vrcp.pop %v920
  %v937 = vrcp.pop %v921
  %v938 = vrcp.pop %v922
  %v939 = vmul.f32 %v844, %v923
  %v940 = vmul.f32 %v846, %v924
  %v941 = vmul.f32 %v848, %v925
  %v942 = vmul.f32 %v850, %v926
  %v943 = vmul.f32 %v852, %v927
  %v944 = vmul.f32 %v854, %v928
  %v945 = vmul.f32 %v856, %v929
  %v946 = vmul.f32 %v858, %v930
  %v947 = vmul.f32 %v860, %v931
  %v948 = vmul.f32 %v862, %v932
  %v949 = vmul.f32 %v864, %v933
  %v950 = vmul.f32 %v866, %v934
  %v951 = vmul.f32 %v868, %v935
  %v952 = vmul.f32 %v870, %v936
  %v953 = vmul.f32 %v872, %v937
  %v954 = vmul.f32 %v874, %v938
  %955 = vmatprep.subr.mxu0 0.0
  %956 = vmatpush1.msra.mxu0 %v153
  %957 = vmatprep.subr.mxu0 0.0
  %958 = vmatpush1.msra.mxu0 %v158
  %959 = vmatprep.subr.mxu0 0.0
  %960 = vmatpush1.msra.mxu0 %v163
  %961 = vmatprep.subr.mxu0 0.0
  %962 = vmatpush1.msra.mxu0 %v168
  %963 = vmatprep.subr.mxu0 0.0
  %964 = vmatpush1.msra.mxu0 %v173
  %965 = vmatprep.subr.mxu0 0.0
  %966 = vmatpush1.msra.mxu0 %v178
  %967 = vmatprep.subr.mxu0 0.0
  %968 = vmatpush1.msra.mxu0 %v183
  %969 = vmatprep.subr.mxu0 0.0
  %970 = vmatpush1.msra.mxu0 %v188
  %971 = vmatprep.subr.mxu0 0.0
  %972 = vmatpush1.msra.mxu0 %v193
  %973 = vmatprep.subr.mxu0 0.0
  %974 = vmatpush1.msra.mxu0 %v198
  %975 = vmatprep.subr.mxu0 0.0
  %976 = vmatpush1.msra.mxu0 %v203
  %977 = vmatprep.subr.mxu0 0.0
  %978 = vmatpush1.msra.mxu0 %v208
  %979 = vmatprep.subr.mxu0 0.0
  %980 = vmatpush1.msra.mxu0 %v213
  %981 = vmatprep.subr.mxu0 0.0
  %982 = vmatpush1.msra.mxu0 %v218
  %983 = vmatprep.subr.mxu0 0.0
  %984 = vmatpush1.msra.mxu0 %v223
  %985 = vmatprep.subr.mxu0 0.0
  %986 = vmatpush1.msra.mxu0 %v228
  %987 = vmatprep.subr.mxu0 0.0
  %988 = vmatpush1.msra.mxu0 0.0
  %989 = vmatprep.subr.mxu0 0.0
  %990 = vmatpush1.msra.mxu0 0.0
  %991 = vmatprep.subr.mxu0 0.0
  %992 = vmatpush1.msra.mxu0 0.0
  %993 = vmatprep.subr.mxu0 0.0
  %994 = vmatpush1.msra.mxu0 0.0
  %995 = vmatprep.subr.mxu0 0.0
  %996 = vmatpush1.msra.mxu0 0.0
  %997 = vmatprep.subr.mxu0 0.0
  %998 = vmatpush1.msra.mxu0 0.0
  %999 = vmatprep.subr.mxu0 0.0
  %1000 = vmatpush1.msra.mxu0 0.0
  %1001 = vmatprep.subr.mxu0 0.0
  %1002 = vmatpush1.msra.mxu0 0.0
  %1003 = vmatprep.subr.mxu0 0.0
  %1004 = vmatpush1.msra.mxu0 0.0
  %1005 = vmatprep.subr.mxu0 0.0
  %1006 = vmatpush1.msra.mxu0 0.0
  %1007 = vmatprep.subr.mxu0 0.0
  %1008 = vmatpush1.msra.mxu0 0.0
  %1009 = vmatprep.subr.mxu0 0.0
  %1010 = vmatpush1.msra.mxu0 0.0
  %1011 = vmatprep.subr.mxu0 0.0
  %1012 = vmatpush1.msra.mxu0 0.0
  %1013 = vmatprep.subr.mxu0 0.0
  %1014 = vmatpush1.msra.mxu0 0.0
  %1015 = vmatprep.subr.mxu0 0.0
  %1016 = vmatpush1.msra.mxu0 0.0
  %1017 = vmatprep.subr.mxu0 0.0
  %1018 = vmatpush1.msra.mxu0 0.0
  %1019 = vmatprep.mubr.f32.mxu0 0.0
  %1020 = vmatmul.mubr.f32.gmra.mrb[0].mxu0 %v939
  %v1021 = vpop.f32.mrb[0].mxu0
  %v1022 = vadd.f32 0.0, %v1021
  %v1023 = vpop.f32.mrb[0].mxu0
  %1024 = vmatprep.mubr.f32.mxu0 0.0
  %1025 = vmatmul.mubr.f32.gmra.mrb[0].mxu0 %v940
  %v1026 = vpop.f32.mrb[0].mxu0
  %v1027 = vadd.f32 0.0, %v1026
  %v1028 = vpop.f32.mrb[0].mxu0
  %1029 = vmatprep.mubr.f32.mxu0 0.0
  %1030 = vmatmul.mubr.f32.gmra.mrb[0].mxu0 %v941
  %v1031 = vpop.f32.mrb[0].mxu0
  %v1032 = vadd.f32 0.0, %v1031
  %v1033 = vpop.f32.mrb[0].mxu0
  %1034 = vmatprep.mubr.f32.mxu0 0.0
  %1035 = vmatmul.mubr.f32.gmra.mrb[0].mxu0 %v942
  %v1036 = vpop.f32.mrb[0].mxu0
  %v1037 = vadd.f32 0.0, %v1036
  %v1038 = vpop.f32.mrb[0].mxu0
  %1039 = vmatprep.mubr.f32.mxu0 0.0
  %1040 = vmatmul.mubr.f32.gmra.mrb[0].mxu0 %v943
  %v1041 = vpop.f32.mrb[0].mxu0
  %v1042 = vadd.f32 0.0, %v1041
  %v1043 = vpop.f32.mrb[0].mxu0
  %1044 = vmatprep.mubr.f32.mxu0 0.0
  %1045 = vmatmul.mubr.f32.gmra.mrb[0].mxu0 %v944
  %v1046 = vpop.f32.mrb[0].mxu0
  %v1047 = vadd.f32 0.0, %v1046
  %v1048 = vpop.f32.mrb[0].mxu0
  %1049 = vmatprep.mubr.f32.mxu0 0.0
  %1050 = vmatmul.mubr.f32.gmra.mrb[0].mxu0 %v945
  %v1051 = vpop.f32.mrb[0].mxu0
  %v1052 = vadd.f32 0.0, %v1051
  %v1053 = vpop.f32.mrb[0].mxu0
  %1054 = vmatprep.mubr.f32.mxu0 0.0
  %1055 = vmatmul.mubr.f32.gmra.mrb[0].mxu0 %v946
  %v1056 = vpop.f32.mrb[0].mxu0
  %v1057 = vadd.f32 0.0, %v1056
  %v1058 = vpop.f32.mrb[0].mxu0
  %1059 = vmatprep.mubr.f32.mxu0 0.0
  %1060 = vmatmul.mubr.f32.gmra.mrb[0].mxu0 %v947
  %v1061 = vpop.f32.mrb[0].mxu0
  %v1062 = vadd.f32 0.0, %v1061
  %v1063 = vpop.f32.mrb[0].mxu0
  %1064 = vmatprep.mubr.f32.mxu0 0.0
  %1065 = vmatmul.mubr.f32.gmra.mrb[0].mxu0 %v948
  %v1066 = vpop.f32.mrb[0].mxu0
  %v1067 = vadd.f32 0.0, %v1066
  %v1068 = vpop.f32.mrb[0].mxu0
  %1069 = vmatprep.mubr.f32.mxu0 0.0
  %1070 = vmatmul.mubr.f32.gmra.mrb[0].mxu0 %v949
  %v1071 = vpop.f32.mrb[0].mxu0
  %v1072 = vadd.f32 0.0, %v1071
  %v1073 = vpop.f32.mrb[0].mxu0
  %1074 = vmatprep.mubr.f32.mxu0 0.0
  %1075 = vmatmul.mubr.f32.gmra.mrb[0].mxu0 %v950
  %v1076 = vpop.f32.mrb[0].mxu0
  %v1077 = vadd.f32 0.0, %v1076
  %v1078 = vpop.f32.mrb[0].mxu0
  %1079 = vmatprep.mubr.f32.mxu0 0.0
  %1080 = vmatmul.mubr.f32.gmra.mrb[0].mxu0 %v951
  %v1081 = vpop.f32.mrb[0].mxu0
  %v1082 = vadd.f32 0.0, %v1081
  %v1083 = vpop.f32.mrb[0].mxu0
  %1084 = vmatprep.mubr.f32.mxu0 0.0
  %1085 = vmatmul.mubr.f32.gmra.mrb[0].mxu0 %v952
  %v1086 = vpop.f32.mrb[0].mxu0
  %v1087 = vadd.f32 0.0, %v1086
  %v1088 = vpop.f32.mrb[0].mxu0
  %1089 = vmatprep.mubr.f32.mxu0 0.0
  %1090 = vmatmul.mubr.f32.gmra.mrb[0].mxu0 %v953
  %v1091 = vpop.f32.mrb[0].mxu0
  %v1092 = vadd.f32 0.0, %v1091
  %v1093 = vpop.f32.mrb[0].mxu0
  %1094 = vmatprep.mubr.f32.mxu0 0.0
  %1095 = vmatmul.mubr.f32.gmra.mrb[0].mxu0 %v954
  %v1096 = vpop.f32.mrb[0].mxu0
  %v1097 = vadd.f32 0.0, %v1096
  %v1098 = vpop.f32.mrb[0].mxu0
  %1099 = vdwg.mxu0
  %1100 = vst [vmem:[%s4] sm:$0xff] %v1022
  %1101 = vst [vmem:[%s4 + $0x8] sm:$0xff] %v1027
  %1102 = vst [vmem:[%s4 + $0x10] sm:$0xff] %v1032
  %1103 = vst [vmem:[%s4 + $0x18] sm:$0xff] %v1037
  %1104 = vst [vmem:[%s4 + $0x20] sm:$0xff] %v1042
  %1105 = vst [vmem:[%s4 + $0x28] sm:$0xff] %v1047
  %1106 = vst [vmem:[%s4 + $0x30] sm:$0xff] %v1052
  %1107 = vst [vmem:[%s4 + $0x38] sm:$0xff] %v1057
  %1108 = vst [vmem:[%s4 + $0x40] sm:$0xff] %v1062
  %1109 = vst [vmem:[%s4 + $0x48] sm:$0xff] %v1067
  %1110 = vst [vmem:[%s4 + $0x50] sm:$0xff] %v1072
  %1111 = vst [vmem:[%s4 + $0x58] sm:$0xff] %v1077
  %1112 = vst [vmem:[%s4 + $0x60] sm:$0xff] %v1082
  %1113 = vst [vmem:[%s4 + $0x68] sm:$0xff] %v1087
  %1114 = vst [vmem:[%s4 + $0x70] sm:$0xff] %v1092
  %1115 = vst [vmem:[%s4 + $0x78] sm:$0xff] %v1097
  // Predicated region
  $region18: #{adsf_forward.1} parent=0 // pred_check
    _
  $region19: #{adsf_forward.1} parent=0 // pred_check_branch
    %1117 = sbr.rel (0) target = $region21
  $region20: #{adsf_forward.1} parent=0 // pred_region
    _
  $region21: #{adsf_forward.1} parent=0 // pred_fallthru
    _
  // Predicated region
  $region22: #{adsf_forward.1} parent=0 // pred_check
    _
  $region23: #{adsf_forward.1} parent=0 // pred_check_branch
    %1119 = sbr.rel (0) target = $region25
  $region24: #{adsf_forward.1} parent=0 // pred_region
    _
  $region25: #{adsf_forward.1} parent=0 // pred_fallthru
    _

</llo_original>
